<compile_context>
chip_gen: v7x
topology: tpu7x:2x2x1
jax: 0.10.0
libtpu: 0.0.40
codegen_flags: <defaults>
</compile_context>

<pallas_src>
import functools

import jax
import jax.numpy as jnp
import numpy as np
from jax.experimental import pallas as pl
from jax.experimental.pallas import tpu as pltpu

# ------------------------- small synthetic config --------------------------
VOCAB = 64          # stands in for DistilBERT vocab_size
D = 128             # stands in for DistilBERT hidden_size (768); mult. of 128
B = 2               # batch
L = 16              # sequence length
CO = 8              # args.kernel_num
KS = (3, 4, 5)      # args.kernel_sizes = "3,4,5"
C = 4               # args.class_num
HEAD_COUNT = 1      # args.head_count

NP = 128            # lane-dense padded feature width (>= len(KS)*CO, >= C*HEAD)
MAX_K = max(KS)


def _round_up(x, m):
    return (x + m - 1) // m * m


# aux slab row layout (single f32 parameter DMA)
OFF_WF = 0                         # rows [0, NP): final linear weight (padded)
OFF_BCONV = NP                     # row NP      : packed conv bias
OFF_BFIN = NP + 1                  # row NP+1    : packed final bias
OFF_MASK = _round_up(NP + 2, 8)    # rows [OFF_MASK, OFF_MASK+L): validity mask
AUX_ROWS = OFF_MASK + L

LP = _round_up(L + MAX_K - 1, 8)   # zero-padded time length fed to the kernel


# ------------------------------ Pallas kernel ------------------------------
def _cnn_text_kernel(x_ref, wconv_ref, aux_ref, hid_ref, logit_ref, *,
                     max_k, seq_len, batch, d_model, n_pad,
                     off_wf, off_bconv, off_bfin, off_mask):
    """Packed conv (all kernel sizes) + ReLU + masked max-pool + final linear.

    x_ref     : (B, LP, D)       bf16, time zero-padded to LP >= L + MAX_K - 1
    wconv_ref : (MAX_K, D, NP)   bf16, tap-k conv weights; kernel-size i lives
                                 in lanes [i*Co, (i+1)*Co), missing taps = 0
    aux_ref   : (AUX_ROWS, NP)   f32 slab: final weight / conv bias /
                                 final bias / (L, NP) time-validity mask
    hid_ref   : (B, NP)          f32, lanes [0, nk*Co) valid
    logit_ref : (B, NP)          f32, lanes [0, C*head) valid
    """
    # --- K-tap "conv" as max_k lane-dense matmuls, M = B*L, N = NP ----------
    x = x_ref[...]                                        # (B, LP, D) bf16
    acc = jnp.zeros((batch * seq_len, n_pad), jnp.float32)
    for k in range(max_k):                                # static, unrolled
        xk = x[:, k:k + seq_len, :].reshape(batch * seq_len, d_model)
        acc = acc + jnp.dot(xk, wconv_ref[k],
                            preferred_element_type=jnp.float32)
    acc = acc.reshape(batch, seq_len, n_pad)

    # --- bias + ReLU + masked max-pool over time (all f32, lane-dense) ------
    bconv = aux_ref[off_bconv:off_bconv + 1, :]           # (1, NP), loaded once
    mask = aux_ref[off_mask:off_mask + seq_len, :]        # (L, NP), 1.0 = valid
    act = jnp.maximum(acc + bconv, 0.0) * mask            # ReLU >= 0, so masked
    hidden = jnp.max(act, axis=1)                         # positions -> 0
    hid_ref[...] = hidden                                 # (B, NP) lane-dense

    # --- final linear projection (padded to NP output lanes) ----------------
    wf = aux_ref[off_wf:off_wf + n_pad, :]                # (NP, NP) f32
    bfin = aux_ref[off_bfin:off_bfin + 1, :]              # (1, NP)
    logit_ref[...] = (
        jnp.dot(hidden, wf, preferred_element_type=jnp.float32) + bfin)


# ----------------------- parameter packing (one-time glue) ------------------
def pack_params(conv_ws, conv_bs, wf, bf):
    """Pack all CNN_Text parameters into two lane-dense, pre-padded slabs."""
    nk = len(KS)
    wconv = np.zeros((MAX_K, D, NP), np.float32)
    aux = np.zeros((AUX_ROWS, NP), np.float32)
    for i, K in enumerate(KS):
        lo, hi = i * CO, (i + 1) * CO
        wconv[:K, :, lo:hi] = np.asarray(conv_ws[i])            # (K, D, Co)
        aux[OFF_BCONV, lo:hi] = np.asarray(conv_bs[i]).reshape(-1)
        aux[OFF_MASK:OFF_MASK + (L - K + 1), lo:hi] = 1.0       # valid t range
    aux[OFF_WF:OFF_WF + nk * CO, :C * HEAD_COUNT] = np.asarray(wf)
    aux[OFF_BFIN, :C * HEAD_COUNT] = np.asarray(bf).reshape(-1)
    # bf16 for the MXU inputs; aux stays f32 (VPU math / final dot in f32).
    return jnp.asarray(wconv, jnp.bfloat16), jnp.asarray(aux, jnp.float32)


# ------------------------------ kernel wrapper ------------------------------
def cnn_text_pallas(x_emb, wconv_packed, aux_packed):
    """x_emb: (B, L, D) f32. Returns (hidden (B, nk*Co), logits (B, C*head))."""
    # Zero-pad time so every tap sees a full-length slice; cast MXU input bf16.
    x_pad = jnp.zeros((B, LP, D), jnp.bfloat16)
    x_pad = x_pad.at[:, :L, :].set(x_emb.astype(jnp.bfloat16))

    kernel = functools.partial(
        _cnn_text_kernel, max_k=MAX_K, seq_len=L, batch=B, d_model=D,
        n_pad=NP, off_wf=OFF_WF, off_bconv=OFF_BCONV, off_bfin=OFF_BFIN,
        off_mask=OFF_MASK)
    vmem = pl.BlockSpec(memory_space=pltpu.MemorySpace.VMEM)
    # TODO(synk): for real DistilBERT shapes (D=768, long L, large B) add a
    # grid over batch (marked "parallel") with BlockSpec index_maps instead of
    # this single whole-array VMEM block, and halve tile sizes on v7x (64 MiB
    # VMEM, 2 TensorCores).
    hid_pad, logit_pad = pl.pallas_call(
        kernel,
        out_shape=(jax.ShapeDtypeStruct((B, NP), jnp.float32),
                   jax.ShapeDtypeStruct((B, NP), jnp.float32)),
        in_specs=[vmem, vmem, vmem],
        out_specs=(vmem, vmem),
    )(x_pad, wconv_packed, aux_packed)
    hidden = hid_pad[:, : len(KS) * CO]          # slice padding back off
    logits = logit_pad[:, : C * HEAD_COUNT]
    return hidden, logits


# ------------------------------ JAX glue ------------------------------------
def cross_entropy_ignore_minus1(logits, y, is_reduction=True):
    """Mirrors nn.CrossEntropyLoss(ignore_index=-1)."""
    valid = (y != -1)
    y_safe = jnp.where(valid, y, 0)
    logp = jax.nn.log_softmax(logits, axis=-1)
    nll = -jnp.take_along_axis(logp, y_safe[:, None], axis=-1)[:, 0]
    nll = jnp.where(valid, nll, 0.0)
    if is_reduction:
        return nll.sum() / jnp.maximum(valid.sum(), 1).astype(nll.dtype)
    return nll


def forward(params, x_ids, y=None, is_reduction=True):
    # Embedding lookup (glue, matches self.embed(x)); dropout = identity (eval).
    x_emb = params["embed"][x_ids]                       # (B, L, D)
    hidden, logits = cnn_text_pallas(
        x_emb, params["wconv_packed"], params["aux_packed"])
    logits = logits.reshape(-1, C)                       # (B*head, C)
    out = (hidden, logits)
    if y is not None:
        y = y.reshape(-1)
        out += (cross_entropy_ignore_minus1(logits, y, is_reduction),)
    return out


def forward_reference(params, x_ids):
    """Pure-JAX f32 reference of the hot path, for a sanity check."""
    x_emb = params["embed"][x_ids]                       # (B, L, D)
    pooled = []
    for w, b, K in zip(params["conv_w"], params["conv_b"], KS):
        lout = L - K + 1
        acc = jnp.zeros((B, lout, CO), jnp.float32)
        for k in range(K):
            acc = acc + jnp.einsum("bld,dc->blc", x_emb[:, k:k + lout, :], w[k])
        acc = jax.nn.relu(acc + b[None, :, :])
        pooled.append(jnp.max(acc, axis=1))
    hidden = jnp.concatenate(pooled, axis=1)
    logits = hidden @ params["wf"] + params["bf"]
    return hidden, logits.reshape(-1, C)


def init_params(key):
    ks = jax.random.split(key, 3 + 2 * len(KS))
    params = {
        "embed": jax.random.normal(ks[0], (VOCAB, D), jnp.float32) * 0.02,
        "conv_w": [],
        "conv_b": [],
    }
    for i, K in enumerate(KS):
        fan_in = K * D
        params["conv_w"].append(
            jax.random.normal(ks[1 + 2 * i], (K, D, CO), jnp.float32)
            / np.sqrt(fan_in))
        params["conv_b"].append(
            jax.random.normal(ks[2 + 2 * i], (1, CO), jnp.float32) * 0.01)
    fan_in = len(KS) * CO
    params["wf"] = (jax.random.normal(ks[-2], (fan_in, C * HEAD_COUNT),
                                      jnp.float32) / np.sqrt(fan_in))
    params["bf"] = jax.random.normal(ks[-1], (1, C * HEAD_COUNT),
                                     jnp.float32) * 0.01
    # Pre-pack everything the kernel needs into two lane-dense slabs.
    params["wconv_packed"], params["aux_packed"] = pack_params(
        params["conv_w"], params["conv_b"], params["wf"], params["bf"])
    return params


if __name__ == "__main__":
    key = jax.random.PRNGKey(0)
    kp, kx = jax.random.split(key)
    params = init_params(kp)

    x_ids = jax.random.randint(kx, (B, L), 0, VOCAB, dtype=jnp.int32)
    y = jnp.array([1, -1], dtype=jnp.int32)   # one valid label, one ignored

    hidden, logits, loss = forward(params, x_ids, y=y, is_reduction=True)
    jax.block_until_ready((hidden, logits, loss))

    # Sanity-check the Pallas hot path against a pure-JAX f32 reference
    # (kernel uses bf16 MXU inputs, so allow small tolerance).
    ref_hidden, ref_logits = forward_reference(params, x_ids)
    np.testing.assert_allclose(np.asarray(hidden), np.asarray(ref_hidden),
                               atol=1e-2, rtol=1e-2)
    np.testing.assert_allclose(np.asarray(logits), np.asarray(ref_logits),
                               atol=1e-2, rtol=1e-2)

    print("KERNEL_OK")
</pallas_src>

<mosaic_0001>
module attributes {stable_mosaic.version = 11 : i64} {
  func.func @_cnn_text_kernel(%arg0: memref<2x24x128xbf16, #tpu.memory_space<vmem>>, %arg1: memref<5x128x128xbf16, #tpu.memory_space<vmem>>, %arg2: memref<152x128xf32, #tpu.memory_space<vmem>>, %arg3: memref<2x128xf32, #tpu.memory_space<vmem>>, %arg4: memref<2x128xf32, #tpu.memory_space<vmem>>) attributes {dimension_semantics = [], scalar_prefetch = 0 : i64, scratch_operands = 0 : i64, tpu.core_type = #tpu.core_type<tc>} {
    %c0 = arith.constant 0 : index
    %c0_0 = arith.constant 0 : index
    %c0_1 = arith.constant 0 : index
    %0 = vector.load %arg0[%c0, %c0_0, %c0_1] : memref<2x24x128xbf16, #tpu.memory_space<vmem>>, vector<2x24x128xbf16>
    %cst = arith.constant 0.000000e+00 : f32
    %1 = vector.broadcast %cst : f32 to vector<32x128xf32>
    %2 = vector.extract_strided_slice %0 {offsets = [0, 0, 0], sizes = [2, 16, 128], strides = [1, 1, 1]} : vector<2x24x128xbf16> to vector<2x16x128xbf16>
    %3 = vector.shape_cast %2 : vector<2x16x128xbf16> to vector<32x128xbf16>
    %c0_2 = arith.constant 0 : index
    %c0_3 = arith.constant 0 : index
    %c0_4 = arith.constant 0 : index
    %4 = vector.load %arg1[%c0_2, %c0_3, %c0_4] : memref<5x128x128xbf16, #tpu.memory_space<vmem>>, vector<1x128x128xbf16>
    %5 = vector.shape_cast %4 : vector<1x128x128xbf16> to vector<128x128xbf16>
    %cst_5 = arith.constant dense<0.000000e+00> : vector<32x128xf32>
    %6 = tpu.matmul %3, %5, %cst_5 {dimension_numbers = #tpu.dot_dimension_numbers<[1], [0], [0], [1], [0, 0, 1, 1], [], []>} : vector<32x128xbf16>, vector<128x128xbf16>, vector<32x128xf32> -> vector<32x128xf32>
    %7 = arith.addf %1, %6 : vector<32x128xf32>
    %8 = vector.extract_strided_slice %0 {offsets = [0, 1, 0], sizes = [2, 16, 128], strides = [1, 1, 1]} : vector<2x24x128xbf16> to vector<2x16x128xbf16>
    %9 = vector.shape_cast %8 : vector<2x16x128xbf16> to vector<32x128xbf16>
    %c1 = arith.constant 1 : index
    %c0_6 = arith.constant 0 : index
    %c0_7 = arith.constant 0 : index
    %10 = vector.load %arg1[%c1, %c0_6, %c0_7] : memref<5x128x128xbf16, #tpu.memory_space<vmem>>, vector<1x128x128xbf16>
    %11 = vector.shape_cast %10 : vector<1x128x128xbf16> to vector<128x128xbf16>
    %cst_8 = arith.constant dense<0.000000e+00> : vector<32x128xf32>
    %12 = tpu.matmul %9, %11, %cst_8 {dimension_numbers = #tpu.dot_dimension_numbers<[1], [0], [0], [1], [0, 0, 1, 1], [], []>} : vector<32x128xbf16>, vector<128x128xbf16>, vector<32x128xf32> -> vector<32x128xf32>
    %13 = arith.addf %7, %12 : vector<32x128xf32>
    %14 = vector.extract_strided_slice %0 {offsets = [0, 2, 0], sizes = [2, 16, 128], strides = [1, 1, 1]} : vector<2x24x128xbf16> to vector<2x16x128xbf16>
    %15 = vector.shape_cast %14 : vector<2x16x128xbf16> to vector<32x128xbf16>
    %c2 = arith.constant 2 : index
    %c0_9 = arith.constant 0 : index
    %c0_10 = arith.constant 0 : index
    %16 = vector.load %arg1[%c2, %c0_9, %c0_10] : memref<5x128x128xbf16, #tpu.memory_space<vmem>>, vector<1x128x128xbf16>
    %17 = vector.shape_cast %16 : vector<1x128x128xbf16> to vector<128x128xbf16>
    %cst_11 = arith.constant dense<0.000000e+00> : vector<32x128xf32>
    %18 = tpu.matmul %15, %17, %cst_11 {dimension_numbers = #tpu.dot_dimension_numbers<[1], [0], [0], [1], [0, 0, 1, 1], [], []>} : vector<32x128xbf16>, vector<128x128xbf16>, vector<32x128xf32> -> vector<32x128xf32>
    %19 = arith.addf %13, %18 : vector<32x128xf32>
    %20 = vector.extract_strided_slice %0 {offsets = [0, 3, 0], sizes = [2, 16, 128], strides = [1, 1, 1]} : vector<2x24x128xbf16> to vector<2x16x128xbf16>
    %21 = vector.shape_cast %20 : vector<2x16x128xbf16> to vector<32x128xbf16>
    %c3 = arith.constant 3 : index
    %c0_12 = arith.constant 0 : index
    %c0_13 = arith.constant 0 : index
    %22 = vector.load %arg1[%c3, %c0_12, %c0_13] : memref<5x128x128xbf16, #tpu.memory_space<vmem>>, vector<1x128x128xbf16>
    %23 = vector.shape_cast %22 : vector<1x128x128xbf16> to vector<128x128xbf16>
    %cst_14 = arith.constant dense<0.000000e+00> : vector<32x128xf32>
    %24 = tpu.matmul %21, %23, %cst_14 {dimension_numbers = #tpu.dot_dimension_numbers<[1], [0], [0], [1], [0, 0, 1, 1], [], []>} : vector<32x128xbf16>, vector<128x128xbf16>, vector<32x128xf32> -> vector<32x128xf32>
    %25 = arith.addf %19, %24 : vector<32x128xf32>
    %26 = vector.extract_strided_slice %0 {offsets = [0, 4, 0], sizes = [2, 16, 128], strides = [1, 1, 1]} : vector<2x24x128xbf16> to vector<2x16x128xbf16>
    %27 = vector.shape_cast %26 : vector<2x16x128xbf16> to vector<32x128xbf16>
    %c4 = arith.constant 4 : index
    %c0_15 = arith.constant 0 : index
    %c0_16 = arith.constant 0 : index
    %28 = vector.load %arg1[%c4, %c0_15, %c0_16] : memref<5x128x128xbf16, #tpu.memory_space<vmem>>, vector<1x128x128xbf16>
    %29 = vector.shape_cast %28 : vector<1x128x128xbf16> to vector<128x128xbf16>
    %cst_17 = arith.constant dense<0.000000e+00> : vector<32x128xf32>
    %30 = tpu.matmul %27, %29, %cst_17 {dimension_numbers = #tpu.dot_dimension_numbers<[1], [0], [0], [1], [0, 0, 1, 1], [], []>} : vector<32x128xbf16>, vector<128x128xbf16>, vector<32x128xf32> -> vector<32x128xf32>
    %31 = arith.addf %25, %30 : vector<32x128xf32>
    %32 = vector.shape_cast %31 : vector<32x128xf32> to vector<2x16x128xf32>
    %c128 = arith.constant 128 : index
    %c0_18 = arith.constant 0 : index
    %33 = vector.load %arg2[%c128, %c0_18] : memref<152x128xf32, #tpu.memory_space<vmem>>, vector<1x128xf32>
    %c136 = arith.constant 136 : index
    %c0_19 = arith.constant 0 : index
    %34 = vector.load %arg2[%c136, %c0_19] : memref<152x128xf32, #tpu.memory_space<vmem>>, vector<16x128xf32>
    %35 = vector.shape_cast %33 : vector<1x128xf32> to vector<1x1x128xf32>
    %36 = vector.broadcast %35 : vector<1x1x128xf32> to vector<2x16x128xf32>
    %37 = arith.addf %32, %36 : vector<2x16x128xf32>
    %cst_20 = arith.constant 0.000000e+00 : f32
    %38 = vector.broadcast %cst_20 : f32 to vector<2x16x128xf32>
    %39 = arith.maximumf %37, %38 : vector<2x16x128xf32>
    %40 = vector.shape_cast %34 : vector<16x128xf32> to vector<1x16x128xf32>
    %41 = vector.broadcast %40 : vector<1x16x128xf32> to vector<2x16x128xf32>
    %42 = arith.mulf %39, %41 : vector<2x16x128xf32>
    %cst_21 = arith.constant dense<0xFF800000> : vector<2x128xf32>
    %43 = vector.multi_reduction <maximumf>, %42, %cst_21 [1] : vector<2x16x128xf32> to vector<2x128xf32>
    %c0_22 = arith.constant 0 : index
    %c0_23 = arith.constant 0 : index
    %44 = vector.load %arg3[%c0_22, %c0_23] : memref<2x128xf32, #tpu.memory_space<vmem>>, vector<2x128xf32>
    tpu.vector_store %arg3[%c0_22, %c0_23], %43 {strides = array<i32>} : memref<2x128xf32, #tpu.memory_space<vmem>>, vector<2x128xf32>,
    %c0_24 = arith.constant 0 : index
    %c0_25 = arith.constant 0 : index
    %45 = vector.load %arg2[%c0_24, %c0_25] : memref<152x128xf32, #tpu.memory_space<vmem>>, vector<128x128xf32>
    %c129 = arith.constant 129 : index
    %c0_26 = arith.constant 0 : index
    %46 = vector.load %arg2[%c129, %c0_26] : memref<152x128xf32, #tpu.memory_space<vmem>>, vector<1x128xf32>
    %cst_27 = arith.constant dense<0.000000e+00> : vector<2x128xf32>
    %47 = tpu.matmul %43, %45, %cst_27 {dimension_numbers = #tpu.dot_dimension_numbers<[1], [0], [0], [1], [0, 0, 1, 1], [], []>} : vector<2x128xf32>, vector<128x128xf32>, vector<2x128xf32> -> vector<2x128xf32>
    %48 = vector.broadcast %46 : vector<1x128xf32> to vector<2x128xf32>
    %49 = arith.addf %47, %48 : vector<2x128xf32>
    %c0_28 = arith.constant 0 : index
    %c0_29 = arith.constant 0 : index
    %50 = vector.load %arg4[%c0_28, %c0_29] : memref<2x128xf32, #tpu.memory_space<vmem>>, vector<2x128xf32>
    tpu.vector_store %arg4[%c0_28, %c0_29], %49 {strides = array<i32>} : memref<2x128xf32, #tpu.memory_space<vmem>>, vector<2x128xf32>,
    return
  }
}

</mosaic_0001>

<llo_original>
// kernel: tpu_custom_call.1
$region0: #{tpu_custom_call.1}
  #allocation0 [shape = 'u32[]', space=smem, size = 0x4, offset = 0x4, fixed_abs, tag = 'smem constant byte address 0x4 - core index']
  #allocation1 [shape = 'u32[144,128]{1,0:T(1,128)}', space=vmem, size = 0x12000, scoped, tag = 'internal scratch']
  %s0 = inlined_call_operand.hbm [shape: bf16[2,24,128], index: 0, kind: input, shape index: {}]
  %s1 = inlined_call_operand.hbm [shape: bf16[5,128,128], index: 1, kind: input, shape index: {}]
  %s2 = inlined_call_operand.hbm [shape: f32[152,128], index: 2, kind: input, shape index: {}]
  %s3 = inlined_call_operand.hbm [shape: f32[2,128], index: 3, kind: output, shape index: {0}]
  %s4 = inlined_call_operand.hbm [shape: f32[2,128], index: 4, kind: output, shape index: {1}]
  %5 = xla_tuple %s3, %s4
  %s6 = sld [smem:[#allocation0]]
  $region42: #{tpu_custom_call.1} parent=0
    _
  %s8 = ssub.s32 1, %s6
  %s9 = scalar_select 0, %s8, %s6
  $region1: #{tpu_custom_call.1} parent=0
    #allocation2 [shape = 'u8[12288]{0}', space=vmem, size = 0x3000, scoped, tag = 'input window, operand 0, single buffered']
    #allocation3 [shape = 's32[1]{0}', space=sflag, size = 0x4, scoped, tag = 'scoped memory for tpu_custom_call.1']
    #allocation4 [shape = 's32[1]{0}', space=sflag, size = 0x4, scoped, tag = 'scoped memory for tpu_custom_call.1']
    #allocation5 [shape = 'u8[163840]{0}', space=vmem, size = 0x28000, scoped, tag = 'input window, operand 1, single buffered']
    #allocation6 [shape = 's32[1]{0}', space=sflag, size = 0x4, scoped, tag = 'scoped memory for tpu_custom_call.1']
    #allocation7 [shape = 'u8[77824]{0}', space=vmem, size = 0x13000, scoped, tag = 'input window, operand 2, single buffered']
    #allocation8 [shape = 'u8[1024]{0}', space=vmem, size = 0x400, scoped, tag = 'output window, operand 0, single buffered']
    #allocation9 [shape = 'u8[1024]{0}', space=vmem, size = 0x400, scoped, tag = 'output window, operand 1, single buffered']
    #allocation10 [shape = 's32[1]{0}', space=sflag, size = 0x4, scoped, tag = 'scoped memory for tpu_custom_call.1']
    %10 = vsyncpa [#allocation3], 0
    %11 = vsyncpa [#allocation6], 0
    %12 = vsyncpa [#allocation4], 0
    %13 = vsyncpa [#allocation10], 0
    // Predicated region
    $region2: #{tpu_custom_call.1} parent=1 // pred_check
      _
    $region3: #{tpu_custom_call.1} parent=1 // pred_check_branch
      %15 = sbr.rel (0) target = $region5
    $region4: #{tpu_custom_call.1} parent=1 // pred_region
      %s17 = ssub.s32 384, 384
      %18 = vsyncadd [#allocation3], %s17
      %s19 = sshll.u32 [#allocation2], 4
      %s20 = int_to_ptr.vmem [resolvable:$true] %s19
      %25 = dma.hbm_to_vmem [thread:$0]  %s0, 384, %s20, [#allocation3], 64, 64, 4
    $region5: #{tpu_custom_call.1} parent=1 // pred_fallthru
      _
    // Predicated region
    $region6: #{tpu_custom_call.1} parent=1 // pred_check
      _
    $region7: #{tpu_custom_call.1} parent=1 // pred_check_branch
      %27 = sbr.rel (0) target = $region9
    $region8: #{tpu_custom_call.1} parent=1 // pred_region
      %s29 = ssub.s32 5120, 5120
      %30 = vsyncadd [#allocation6], %s29
      %s31 = sshll.u32 [#allocation5], 4
      %s32 = int_to_ptr.vmem [resolvable:$true] %s31
      %37 = dma.hbm_to_vmem [thread:$0]  %s1, 5120, %s32, [#allocation6], 64, 64, 4
    $region9: #{tpu_custom_call.1} parent=1 // pred_fallthru
      _
    // Predicated region
    $region10: #{tpu_custom_call.1} parent=1 // pred_check
      _
    $region11: #{tpu_custom_call.1} parent=1 // pred_check_branch
      %39 = sbr.rel (0) target = $region13
    $region12: #{tpu_custom_call.1} parent=1 // pred_region
      %s41 = ssub.s32 2432, 2432
      %42 = vsyncadd [#allocation6], %s41
      %s43 = sshll.u32 [#allocation7], 4
      %s44 = int_to_ptr.vmem [resolvable:$true] %s43
      %49 = dma.hbm_to_vmem [thread:$0]  %s2, 2432, %s44, [#allocation6], 128, 128, 8
    $region13: #{tpu_custom_call.1} parent=1 // pred_fallthru
      _
    // Predicated region
    $region14: #{tpu_custom_call.1} parent=1 // pred_check
      _
    $region15: #{tpu_custom_call.1} parent=1 // pred_check_branch
      %51 = sbr.rel (0) target = $region17
    $region16: #{tpu_custom_call.1} parent=1 // pred_region
      %52 = dma.done [#allocation3], 384
    $region17: #{tpu_custom_call.1} parent=1 // pred_fallthru
      _
    // Predicated region
    $region18: #{tpu_custom_call.1} parent=1 // pred_check
      _
    $region19: #{tpu_custom_call.1} parent=1 // pred_check_branch
      %54 = sbr.rel (0) target = $region21
    $region20: #{tpu_custom_call.1} parent=1 // pred_region
      %55 = dma.done [#allocation6], 5120
    $region21: #{tpu_custom_call.1} parent=1 // pred_fallthru
      _
    // Predicated region
    $region22: #{tpu_custom_call.1} parent=1 // pred_check
      _
    $region23: #{tpu_custom_call.1} parent=1 // pred_check_branch
      %57 = sbr.rel (0) target = $region25
    $region24: #{tpu_custom_call.1} parent=1 // pred_region
      %58 = dma.done [#allocation6], 2432
    $region25: #{tpu_custom_call.1} parent=1 // pred_fallthru
      _
    %v60 = vld [vmem:[#allocation2] sm:$0xf]
    %v61 = vld [vmem:[#allocation2 + $0x4] sm:$0xf]
    %v62 = vld [vmem:[#allocation2 + $0x8] sm:$0xf]
    %v63 = vld [vmem:[#allocation2 + $0xc] sm:$0xf]
    %v64 = vld [vmem:[#allocation2 + $0x10] sm:$0xf]
    %v65 = vld [vmem:[#allocation2 + $0x14] sm:$0xf]
    %v66 = vld [vmem:[#allocation5] sm:$0xf]
    %v67 = vld [vmem:[#allocation5 + $0x4] sm:$0xf]
    %v68 = vld [vmem:[#allocation5 + $0x8] sm:$0xf]
    %v69 = vld [vmem:[#allocation5 + $0xc] sm:$0xf]
    %v70 = vld [vmem:[#allocation5 + $0x10] sm:$0xf]
    %v71 = vld [vmem:[#allocation5 + $0x14] sm:$0xf]
    %v72 = vld [vmem:[#allocation5 + $0x18] sm:$0xf]
    %v73 = vld [vmem:[#allocation5 + $0x1c] sm:$0xf]
    %v74 = vld [vmem:[#allocation5 + $0x20] sm:$0xf]
    %v75 = vld [vmem:[#allocation5 + $0x24] sm:$0xf]
    %v76 = vld [vmem:[#allocation5 + $0x28] sm:$0xf]
    %v77 = vld [vmem:[#allocation5 + $0x2c] sm:$0xf]
    %v78 = vld [vmem:[#allocation5 + $0x30] sm:$0xf]
    %v79 = vld [vmem:[#allocation5 + $0x34] sm:$0xf]
    %v80 = vld [vmem:[#allocation5 + $0x38] sm:$0xf]
    %v81 = vld [vmem:[#allocation5 + $0x3c] sm:$0xf]
    %vm82 = vsmask.f32 3328
    %vm83 = vsmask.f32 7440
    %vm84 = vmor %vm82, %vm83
    %v86 = vshrl.u32 %v60, 16
    %v88 = vrot.slane %v86, 4
    %v89 = vshll.u32 %v60, 16
    %v91 = vrot.slane %v89, 5
    %v92 = vor.u32 %v88, %v91
    %v93 = vrot.slane %v92, 4
    %v95 = vshll.u32 %v61, 16
    %v97 = vrot.slane %v95, 5
    %v98 = vsel %vm84, %v93, %v97
    %v99 = vshrl.u32 %v61, 16
    %v101 = vrot.slane %v99, 4
    %v102 = vor.u32 %v101, %v97
    %v103 = vrot.slane %v102, 4
    %v105 = vshll.u32 %v62, 16
    %v107 = vrot.slane %v105, 5
    %v108 = vsel %vm84, %v103, %v107
    %v110 = vshrl.u32 %v63, 16
    %v112 = vrot.slane %v110, 4
    %v113 = vshll.u32 %v63, 16
    %v115 = vrot.slane %v113, 5
    %v116 = vor.u32 %v112, %v115
    %v117 = vrot.slane %v116, 4
    %v119 = vshll.u32 %v64, 16
    %v121 = vrot.slane %v119, 5
    %v122 = vsel %vm84, %v117, %v121
    %v123 = vshrl.u32 %v64, 16
    %v125 = vrot.slane %v123, 4
    %v126 = vor.u32 %v125, %v121
    %v127 = vrot.slane %v126, 4
    %v129 = vshll.u32 %v65, 16
    %v131 = vrot.slane %v129, 5
    %v132 = vsel %vm84, %v127, %v131
    %s133 = scalar_lea.vmem [#allocation5], 64
    %v134 = vld [vmem:[%s133] sm:$0xf]
    %v135 = vld [vmem:[%s133 + $0x4] sm:$0xf]
    %v136 = vld [vmem:[%s133 + $0x8] sm:$0xf]
    %v137 = vld [vmem:[%s133 + $0xc] sm:$0xf]
    %v138 = vld [vmem:[%s133 + $0x10] sm:$0xf]
    %v139 = vld [vmem:[%s133 + $0x14] sm:$0xf]
    %v140 = vld [vmem:[%s133 + $0x18] sm:$0xf]
    %v141 = vld [vmem:[%s133 + $0x1c] sm:$0xf]
    %v142 = vld [vmem:[%s133 + $0x20] sm:$0xf]
    %v143 = vld [vmem:[%s133 + $0x24] sm:$0xf]
    %v144 = vld [vmem:[%s133 + $0x28] sm:$0xf]
    %v145 = vld [vmem:[%s133 + $0x2c] sm:$0xf]
    %v146 = vld [vmem:[%s133 + $0x30] sm:$0xf]
    %v147 = vld [vmem:[%s133 + $0x34] sm:$0xf]
    %v148 = vld [vmem:[%s133 + $0x38] sm:$0xf]
    %v149 = vld [vmem:[%s133 + $0x3c] sm:$0xf]
    %v150 = vunpack.c.l.b16 %v98
    %v151 = vunpack.c.l.b16 %v108
    %v152 = vunpack.c.l.b16 %v122
    %v153 = vunpack.c.l.b16 %v132
    %v154 = vpack.c.b16 %v151, %v150
    %v155 = vpack.c.b16 %v153, %v152
    %v174 = vunpack.c.l.b16 %v134
    %v175 = vunpack.c.l.b16 %v135
    %v176 = vunpack.c.l.b16 %v136
    %v177 = vunpack.c.l.b16 %v137
    %v178 = vunpack.c.l.b16 %v138
    %v179 = vunpack.c.l.b16 %v139
    %v180 = vunpack.c.l.b16 %v140
    %v181 = vunpack.c.l.b16 %v141
    %v182 = vunpack.c.l.b16 %v142
    %v183 = vunpack.c.l.b16 %v143
    %v184 = vunpack.c.l.b16 %v144
    %v185 = vunpack.c.l.b16 %v145
    %v186 = vunpack.c.l.b16 %v146
    %v187 = vunpack.c.l.b16 %v147
    %v188 = vunpack.c.l.b16 %v148
    %v189 = vunpack.c.l.b16 %v149
    %v190 = vpack.c.b16 %v175, %v174
    %v191 = vpack.c.b16 %v177, %v176
    %v192 = vpack.c.b16 %v179, %v178
    %v193 = vpack.c.b16 %v181, %v180
    %v194 = vpack.c.b16 %v183, %v182
    %v195 = vpack.c.b16 %v185, %v184
    %v196 = vpack.c.b16 %v187, %v186
    %v197 = vpack.c.b16 %v189, %v188
    %206 = vmatprep.subr.bf16.mxu0 0
    %207 = vmatpush1.bf16.msra.mxu0 %v190
    %208 = vmatprep.subr.bf16.mxu0 0
    %209 = vmatpush1.bf16.msra.mxu0 %v191
    %210 = vmatprep.subr.bf16.mxu0 0
    %211 = vmatpush1.bf16.msra.mxu0 %v192
    %212 = vmatprep.subr.bf16.mxu0 0
    %213 = vmatpush1.bf16.msra.mxu0 %v193
    %214 = vmatprep.subr.bf16.mxu0 0
    %215 = vmatpush1.bf16.msra.mxu0 %v194
    %216 = vmatprep.subr.bf16.mxu0 0
    %217 = vmatpush1.bf16.msra.mxu0 %v195
    %218 = vmatprep.subr.bf16.mxu0 0
    %219 = vmatpush1.bf16.msra.mxu0 %v196
    %220 = vmatprep.subr.bf16.mxu0 0
    %221 = vmatpush1.bf16.msra.mxu0 %v197
    %222 = vmatprep.subr.bf16.mxu0 0
    %223 = vmatpush1.bf16.msra.mxu0 0
    %224 = vmatprep.subr.bf16.mxu0 0
    %225 = vmatpush1.bf16.msra.mxu0 0
    %226 = vmatprep.subr.bf16.mxu0 0
    %227 = vmatpush1.bf16.msra.mxu0 0
    %228 = vmatprep.subr.bf16.mxu0 0
    %229 = vmatpush1.bf16.msra.mxu0 0
    %230 = vmatprep.subr.bf16.mxu0 0
    %231 = vmatpush1.bf16.msra.mxu0 0
    %232 = vmatprep.subr.bf16.mxu0 0
    %233 = vmatpush1.bf16.msra.mxu0 0
    %234 = vmatprep.subr.bf16.mxu0 0
    %235 = vmatpush1.bf16.msra.mxu0 0
    %236 = vmatprep.subr.bf16.mxu0 0
    %237 = vmatpush1.bf16.msra.mxu0 0
    %238 = vmatprep.mubr.bf16.mxu0 0
    %239 = vmatmul.mubr.bf16.gmra.mrb[0].mxu0 %v154
    %v240 = vpop.f32.mrb[0].mxu0
    %v241 = vadd.f32 0.0, %v240
    %v242 = vpop.f32.mrb[0].mxu0
    %v243 = vpop.f32.mrb[0].mxu0
    %v244 = vadd.f32 0.0, %v243
    %v245 = vpop.f32.mrb[0].mxu0
    %246 = vmatprep.mubr.bf16.mxu0 0
    %247 = vmatmul.mubr.bf16.gmra.mrb[0].mxu0 %v155
    %v248 = vpop.f32.mrb[0].mxu0
    %v249 = vadd.f32 0.0, %v248
    %v250 = vpop.f32.mrb[0].mxu0
    %v251 = vpop.f32.mrb[0].mxu0
    %v252 = vadd.f32 0.0, %v251
    %v253 = vpop.f32.mrb[0].mxu0
    %254 = vdwg.mxu0
    %v259 = vunpack.c.l.b16 %v60
    %v260 = vunpack.c.l.b16 %v61
    %v261 = vunpack.c.l.b16 %v63
    %v262 = vunpack.c.l.b16 %v64
    %v263 = vpack.c.b16 %v260, %v259
    %v264 = vpack.c.b16 %v262, %v261
    %v283 = vunpack.c.l.b16 %v66
    %v284 = vunpack.c.l.b16 %v67
    %v285 = vunpack.c.l.b16 %v68
    %v286 = vunpack.c.l.b16 %v69
    %v287 = vunpack.c.l.b16 %v70
    %v288 = vunpack.c.l.b16 %v71
    %v289 = vunpack.c.l.b16 %v72
    %v290 = vunpack.c.l.b16 %v73
    %v291 = vunpack.c.l.b16 %v74
    %v292 = vunpack.c.l.b16 %v75
    %v293 = vunpack.c.l.b16 %v76
    %v294 = vunpack.c.l.b16 %v77
    %v295 = vunpack.c.l.b16 %v78
    %v296 = vunpack.c.l.b16 %v79
    %v297 = vunpack.c.l.b16 %v80
    %v298 = vunpack.c.l.b16 %v81
    %v299 = vpack.c.b16 %v284, %v283
    %v300 = vpack.c.b16 %v286, %v285
    %v301 = vpack.c.b16 %v288, %v287
    %v302 = vpack.c.b16 %v290, %v289
    %v303 = vpack.c.b16 %v292, %v291
    %v304 = vpack.c.b16 %v294, %v293
    %v305 = vpack.c.b16 %v296, %v295
    %v306 = vpack.c.b16 %v298, %v297
    %315 = vmatprep.subr.bf16.mxu0 0
    %316 = vmatpush1.bf16.msra.mxu0 %v299
    %317 = vmatprep.subr.bf16.mxu0 0
    %318 = vmatpush1.bf16.msra.mxu0 %v300
    %319 = vmatprep.subr.bf16.mxu0 0
    %320 = vmatpush1.bf16.msra.mxu0 %v301
    %321 = vmatprep.subr.bf16.mxu0 0
    %322 = vmatpush1.bf16.msra.mxu0 %v302
    %323 = vmatprep.subr.bf16.mxu0 0
    %324 = vmatpush1.bf16.msra.mxu0 %v303
    %325 = vmatprep.subr.bf16.mxu0 0
    %326 = vmatpush1.bf16.msra.mxu0 %v304
    %327 = vmatprep.subr.bf16.mxu0 0
    %328 = vmatpush1.bf16.msra.mxu0 %v305
    %329 = vmatprep.subr.bf16.mxu0 0
    %330 = vmatpush1.bf16.msra.mxu0 %v306
    %331 = vmatprep.subr.bf16.mxu0 0
    %332 = vmatpush1.bf16.msra.mxu0 0
    %333 = vmatprep.subr.bf16.mxu0 0
    %334 = vmatpush1.bf16.msra.mxu0 0
    %335 = vmatprep.subr.bf16.mxu0 0
    %336 = vmatpush1.bf16.msra.mxu0 0
    %337 = vmatprep.subr.bf16.mxu0 0
    %338 = vmatpush1.bf16.msra.mxu0 0
    %339 = vmatprep.subr.bf16.mxu0 0
    %340 = vmatpush1.bf16.msra.mxu0 0
    %341 = vmatprep.subr.bf16.mxu0 0
    %342 = vmatpush1.bf16.msra.mxu0 0
    %343 = vmatprep.subr.bf16.mxu0 0
    %344 = vmatpush1.bf16.msra.mxu0 0
    %345 = vmatprep.subr.bf16.mxu0 0
    %346 = vmatpush1.bf16.msra.mxu0 0
    %347 = vmatprep.mubr.bf16.mxu0 0
    %348 = vmatmul.mubr.bf16.gmra.mrb[0].mxu0 %v263
    %v349 = vpop.f32.mrb[0].mxu0
    %v350 = vadd.f32 %v241, %v349
    %v351 = vpop.f32.mrb[0].mxu0
    %v352 = vpop.f32.mrb[0].mxu0
    %v353 = vadd.f32 %v244, %v352
    %v354 = vpop.f32.mrb[0].mxu0
    %355 = vmatprep.mubr.bf16.mxu0 0
    %356 = vmatmul.mubr.bf16.gmra.mrb[0].mxu0 %v264
    %v357 = vpop.f32.mrb[0].mxu0
    %v358 = vadd.f32 %v249, %v357
    %v359 = vpop.f32.mrb[0].mxu0
    %v360 = vpop.f32.mrb[0].mxu0
    %v361 = vadd.f32 %v252, %v360
    %v362 = vpop.f32.mrb[0].mxu0
    %363 = vdwg.mxu0
    %vm366 = vcmask 1042432
    %vm367 = vcmask 1046532
    %vm368 = vmor %vm366, %vm367
    %v369 = vrot.slane %v60, 5
    %v370 = vrot.slane %v369, 4
    %v371 = vrot.slane %v61, 5
    %v372 = vsel %vm368, %v370, %v371
    %v373 = vrot.slane %v371, 4
    %v374 = vrot.slane %v62, 5
    %v375 = vsel %vm368, %v373, %v374
    %v376 = vrot.slane %v63, 5
    %v377 = vrot.slane %v376, 4
    %v378 = vrot.slane %v64, 5
    %v379 = vsel %vm368, %v377, %v378
    %v380 = vrot.slane %v378, 4
    %v381 = vrot.slane %v65, 5
    %v382 = vsel %vm368, %v380, %v381
    %s383 = scalar_lea.vmem [#allocation5], 128
    %v384 = vld [vmem:[%s383] sm:$0xf]
    %v385 = vld [vmem:[%s383 + $0x4] sm:$0xf]
    %v386 = vld [vmem:[%s383 + $0x8] sm:$0xf]
    %v387 = vld [vmem:[%s383 + $0xc] sm:$0xf]
    %v388 = vld [vmem:[%s383 + $0x10] sm:$0xf]
    %v389 = vld [vmem:[%s383 + $0x14] sm:$0xf]
    %v390 = vld [vmem:[%s383 + $0x18] sm:$0xf]
    %v391 = vld [vmem:[%s383 + $0x1c] sm:$0xf]
    %v392 = vld [vmem:[%s383 + $0x20] sm:$0xf]
    %v393 = vld [vmem:[%s383 + $0x24] sm:$0xf]
    %v394 = vld [vmem:[%s383 + $0x28] sm:$0xf]
    %v395 = vld [vmem:[%s383 + $0x2c] sm:$0xf]
    %v396 = vld [vmem:[%s383 + $0x30] sm:$0xf]
    %v397 = vld [vmem:[%s383 + $0x34] sm:$0xf]
    %v398 = vld [vmem:[%s383 + $0x38] sm:$0xf]
    %v399 = vld [vmem:[%s383 + $0x3c] sm:$0xf]
    %v400 = vunpack.c.l.b16 %v372
    %v401 = vunpack.c.l.b16 %v375
    %v402 = vunpack.c.l.b16 %v379
    %v403 = vunpack.c.l.b16 %v382
    %v404 = vpack.c.b16 %v401, %v400
    %v405 = vpack.c.b16 %v403, %v402
    %v424 = vunpack.c.l.b16 %v384
    %v425 = vunpack.c.l.b16 %v385
    %v426 = vunpack.c.l.b16 %v386
    %v427 = vunpack.c.l.b16 %v387
    %v428 = vunpack.c.l.b16 %v388
    %v429 = vunpack.c.l.b16 %v389
    %v430 = vunpack.c.l.b16 %v390
    %v431 = vunpack.c.l.b16 %v391
    %v432 = vunpack.c.l.b16 %v392
    %v433 = vunpack.c.l.b16 %v393
    %v434 = vunpack.c.l.b16 %v394
    %v435 = vunpack.c.l.b16 %v395
    %v436 = vunpack.c.l.b16 %v396
    %v437 = vunpack.c.l.b16 %v397
    %v438 = vunpack.c.l.b16 %v398
    %v439 = vunpack.c.l.b16 %v399
    %v440 = vpack.c.b16 %v425, %v424
    %v441 = vpack.c.b16 %v427, %v426
    %v442 = vpack.c.b16 %v429, %v428
    %v443 = vpack.c.b16 %v431, %v430
    %v444 = vpack.c.b16 %v433, %v432
    %v445 = vpack.c.b16 %v435, %v434
    %v446 = vpack.c.b16 %v437, %v436
    %v447 = vpack.c.b16 %v439, %v438
    %456 = vmatprep.subr.bf16.mxu0 0
    %457 = vmatpush1.bf16.msra.mxu0 %v440
    %458 = vmatprep.subr.bf16.mxu0 0
    %459 = vmatpush1.bf16.msra.mxu0 %v441
    %460 = vmatprep.subr.bf16.mxu0 0
    %461 = vmatpush1.bf16.msra.mxu0 %v442
    %462 = vmatprep.subr.bf16.mxu0 0
    %463 = vmatpush1.bf16.msra.mxu0 %v443
    %464 = vmatprep.subr.bf16.mxu0 0
    %465 = vmatpush1.bf16.msra.mxu0 %v444
    %466 = vmatprep.subr.bf16.mxu0 0
    %467 = vmatpush1.bf16.msra.mxu0 %v445
    %468 = vmatprep.subr.bf16.mxu0 0
    %469 = vmatpush1.bf16.msra.mxu0 %v446
    %470 = vmatprep.subr.bf16.mxu0 0
    %471 = vmatpush1.bf16.msra.mxu0 %v447
    %472 = vmatprep.subr.bf16.mxu0 0
    %473 = vmatpush1.bf16.msra.mxu0 0
    %474 = vmatprep.subr.bf16.mxu0 0
    %475 = vmatpush1.bf16.msra.mxu0 0
    %476 = vmatprep.subr.bf16.mxu0 0
    %477 = vmatpush1.bf16.msra.mxu0 0
    %478 = vmatprep.subr.bf16.mxu0 0
    %479 = vmatpush1.bf16.msra.mxu0 0
    %480 = vmatprep.subr.bf16.mxu0 0
    %481 = vmatpush1.bf16.msra.mxu0 0
    %482 = vmatprep.subr.bf16.mxu0 0
    %483 = vmatpush1.bf16.msra.mxu0 0
    %484 = vmatprep.subr.bf16.mxu0 0
    %485 = vmatpush1.bf16.msra.mxu0 0
    %486 = vmatprep.subr.bf16.mxu0 0
    %487 = vmatpush1.bf16.msra.mxu0 0
    %488 = vmatprep.mubr.bf16.mxu0 0
    %489 = vmatmul.mubr.bf16.gmra.mrb[0].mxu0 %v404
    %v490 = vpop.f32.mrb[0].mxu0
    %v491 = vadd.f32 0.0, %v490
    %v492 = vpop.f32.mrb[0].mxu0
    %v493 = vpop.f32.mrb[0].mxu0
    %v494 = vadd.f32 0.0, %v493
    %v495 = vpop.f32.mrb[0].mxu0
    %496 = vmatprep.mubr.bf16.mxu0 0
    %497 = vmatmul.mubr.bf16.gmra.mrb[0].mxu0 %v405
    %v498 = vpop.f32.mrb[0].mxu0
    %v499 = vadd.f32 0.0, %v498
    %v500 = vpop.f32.mrb[0].mxu0
    %v501 = vpop.f32.mrb[0].mxu0
    %v502 = vadd.f32 0.0, %v501
    %v503 = vpop.f32.mrb[0].mxu0
    %504 = vdwg.mxu0
    %v505 = vadd.f32 %v350, %v491
    %v506 = vadd.f32 %v353, %v494
    %v507 = vadd.f32 %v358, %v499
    %v508 = vadd.f32 %v361, %v502
    %vm509 = vsmask.f32 2304
    %vm510 = vsmask.f32 6416
    %vm511 = vmor %vm509, %vm510
    %v512 = vrot.slane %v86, 5
    %v513 = vrot.slane %v89, 6
    %v514 = vor.u32 %v512, %v513
    %v515 = vrot.slane %v514, 4
    %v516 = vrot.slane %v99, 5
    %v517 = vrot.slane %v95, 6
    %v518 = vor.u32 %v516, %v517
    %v519 = vsel %vm511, %v515, %v518
    %v520 = vrot.slane %v518, 4
    %v521 = vshrl.u32 %v62, 16
    %v523 = vrot.slane %v521, 5
    %v524 = vrot.slane %v105, 6
    %v525 = vor.u32 %v523, %v524
    %v526 = vsel %vm511, %v520, %v525
    %v527 = vrot.slane %v110, 5
    %v528 = vrot.slane %v113, 6
    %v529 = vor.u32 %v527, %v528
    %v530 = vrot.slane %v529, 4
    %v531 = vrot.slane %v123, 5
    %v532 = vrot.slane %v119, 6
    %v533 = vor.u32 %v531, %v532
    %v534 = vsel %vm511, %v530, %v533
    %v535 = vrot.slane %v533, 4
    %v536 = vshrl.u32 %v65, 16
    %v538 = vrot.slane %v536, 5
    %v539 = vrot.slane %v129, 6
    %v540 = vor.u32 %v538, %v539
    %v541 = vsel %vm511, %v535, %v540
    %s542 = scalar_lea.vmem [#allocation5], 192
    %v543 = vld [vmem:[%s542] sm:$0xf]
    %v544 = vld [vmem:[%s542 + $0x4] sm:$0xf]
    %v545 = vld [vmem:[%s542 + $0x8] sm:$0xf]
    %v546 = vld [vmem:[%s542 + $0xc] sm:$0xf]
    %v547 = vld [vmem:[%s542 + $0x10] sm:$0xf]
    %v548 = vld [vmem:[%s542 + $0x14] sm:$0xf]
    %v549 = vld [vmem:[%s542 + $0x18] sm:$0xf]
    %v550 = vld [vmem:[%s542 + $0x1c] sm:$0xf]
    %v551 = vld [vmem:[%s542 + $0x20] sm:$0xf]
    %v552 = vld [vmem:[%s542 + $0x24] sm:$0xf]
    %v553 = vld [vmem:[%s542 + $0x28] sm:$0xf]
    %v554 = vld [vmem:[%s542 + $0x2c] sm:$0xf]
    %v555 = vld [vmem:[%s542 + $0x30] sm:$0xf]
    %v556 = vld [vmem:[%s542 + $0x34] sm:$0xf]
    %v557 = vld [vmem:[%s542 + $0x38] sm:$0xf]
    %v558 = vld [vmem:[%s542 + $0x3c] sm:$0xf]
    %v559 = vunpack.c.l.b16 %v519
    %v560 = vunpack.c.l.b16 %v526
    %v561 = vunpack.c.l.b16 %v534
    %v562 = vunpack.c.l.b16 %v541
    %v563 = vpack.c.b16 %v560, %v559
    %v564 = vpack.c.b16 %v562, %v561
    %v583 = vunpack.c.l.b16 %v543
    %v584 = vunpack.c.l.b16 %v544
    %v585 = vunpack.c.l.b16 %v545
    %v586 = vunpack.c.l.b16 %v546
    %v587 = vunpack.c.l.b16 %v547
    %v588 = vunpack.c.l.b16 %v548
    %v589 = vunpack.c.l.b16 %v549
    %v590 = vunpack.c.l.b16 %v550
    %v591 = vunpack.c.l.b16 %v551
    %v592 = vunpack.c.l.b16 %v552
    %v593 = vunpack.c.l.b16 %v553
    %v594 = vunpack.c.l.b16 %v554
    %v595 = vunpack.c.l.b16 %v555
    %v596 = vunpack.c.l.b16 %v556
    %v597 = vunpack.c.l.b16 %v557
    %v598 = vunpack.c.l.b16 %v558
    %v599 = vpack.c.b16 %v584, %v583
    %v600 = vpack.c.b16 %v586, %v585
    %v601 = vpack.c.b16 %v588, %v587
    %v602 = vpack.c.b16 %v590, %v589
    %v603 = vpack.c.b16 %v592, %v591
    %v604 = vpack.c.b16 %v594, %v593
    %v605 = vpack.c.b16 %v596, %v595
    %v606 = vpack.c.b16 %v598, %v597
    %615 = vmatprep.subr.bf16.mxu0 0
    %616 = vmatpush1.bf16.msra.mxu0 %v599
    %617 = vmatprep.subr.bf16.mxu0 0
    %618 = vmatpush1.bf16.msra.mxu0 %v600
    %619 = vmatprep.subr.bf16.mxu0 0
    %620 = vmatpush1.bf16.msra.mxu0 %v601
    %621 = vmatprep.subr.bf16.mxu0 0
    %622 = vmatpush1.bf16.msra.mxu0 %v602
    %623 = vmatprep.subr.bf16.mxu0 0
    %624 = vmatpush1.bf16.msra.mxu0 %v603
    %625 = vmatprep.subr.bf16.mxu0 0
    %626 = vmatpush1.bf16.msra.mxu0 %v604
    %627 = vmatprep.subr.bf16.mxu0 0
    %628 = vmatpush1.bf16.msra.mxu0 %v605
    %629 = vmatprep.subr.bf16.mxu0 0
    %630 = vmatpush1.bf16.msra.mxu0 %v606
    %631 = vmatprep.subr.bf16.mxu0 0
    %632 = vmatpush1.bf16.msra.mxu0 0
    %633 = vmatprep.subr.bf16.mxu0 0
    %634 = vmatpush1.bf16.msra.mxu0 0
    %635 = vmatprep.subr.bf16.mxu0 0
    %636 = vmatpush1.bf16.msra.mxu0 0
    %637 = vmatprep.subr.bf16.mxu0 0
    %638 = vmatpush1.bf16.msra.mxu0 0
    %639 = vmatprep.subr.bf16.mxu0 0
    %640 = vmatpush1.bf16.msra.mxu0 0
    %641 = vmatprep.subr.bf16.mxu0 0
    %642 = vmatpush1.bf16.msra.mxu0 0
    %643 = vmatprep.subr.bf16.mxu0 0
    %644 = vmatpush1.bf16.msra.mxu0 0
    %645 = vmatprep.subr.bf16.mxu0 0
    %646 = vmatpush1.bf16.msra.mxu0 0
    %647 = vmatprep.mubr.bf16.mxu0 0
    %648 = vmatmul.mubr.bf16.gmra.mrb[0].mxu0 %v563
    %v649 = vpop.f32.mrb[0].mxu0
    %v650 = vadd.f32 0.0, %v649
    %v651 = vpop.f32.mrb[0].mxu0
    %v652 = vpop.f32.mrb[0].mxu0
    %v653 = vadd.f32 0.0, %v652
    %v654 = vpop.f32.mrb[0].mxu0
    %655 = vmatprep.mubr.bf16.mxu0 0
    %656 = vmatmul.mubr.bf16.gmra.mrb[0].mxu0 %v564
    %v657 = vpop.f32.mrb[0].mxu0
    %v658 = vadd.f32 0.0, %v657
    %v659 = vpop.f32.mrb[0].mxu0
    %v660 = vpop.f32.mrb[0].mxu0
    %v661 = vadd.f32 0.0, %v660
    %v662 = vpop.f32.mrb[0].mxu0
    %663 = vdwg.mxu0
    %v664 = vadd.f32 %v505, %v650
    %v665 = vadd.f32 %v506, %v653
    %v666 = vadd.f32 %v507, %v658
    %v667 = vadd.f32 %v508, %v661
    %vm668 = vcmask 1041408
    %vm669 = vcmask 1045508
    %vm670 = vmor %vm668, %vm669
    %v671 = vrot.slane %v60, 6
    %v672 = vrot.slane %v671, 4
    %v673 = vrot.slane %v61, 6
    %v674 = vsel %vm670, %v672, %v673
    %v675 = vrot.slane %v673, 4
    %v676 = vrot.slane %v62, 6
    %v677 = vsel %vm670, %v675, %v676
    %v678 = vrot.slane %v63, 6
    %v679 = vrot.slane %v678, 4
    %v680 = vrot.slane %v64, 6
    %v681 = vsel %vm670, %v679, %v680
    %v682 = vrot.slane %v680, 4
    %v683 = vrot.slane %v65, 6
    %v684 = vsel %vm670, %v682, %v683
    %s685 = scalar_lea.vmem [#allocation5], 256
    %v686 = vld [vmem:[%s685] sm:$0xf]
    %v687 = vld [vmem:[%s685 + $0x4] sm:$0xf]
    %v688 = vld [vmem:[%s685 + $0x8] sm:$0xf]
    %v689 = vld [vmem:[%s685 + $0xc] sm:$0xf]
    %v690 = vld [vmem:[%s685 + $0x10] sm:$0xf]
    %v691 = vld [vmem:[%s685 + $0x14] sm:$0xf]
    %v692 = vld [vmem:[%s685 + $0x18] sm:$0xf]
    %v693 = vld [vmem:[%s685 + $0x1c] sm:$0xf]
    %v694 = vld [vmem:[%s685 + $0x20] sm:$0xf]
    %v695 = vld [vmem:[%s685 + $0x24] sm:$0xf]
    %v696 = vld [vmem:[%s685 + $0x28] sm:$0xf]
    %v697 = vld [vmem:[%s685 + $0x2c] sm:$0xf]
    %v698 = vld [vmem:[%s685 + $0x30] sm:$0xf]
    %v699 = vld [vmem:[%s685 + $0x34] sm:$0xf]
    %v700 = vld [vmem:[%s685 + $0x38] sm:$0xf]
    %v701 = vld [vmem:[%s685 + $0x3c] sm:$0xf]
    %v702 = vunpack.c.l.b16 %v674
    %v703 = vunpack.c.l.b16 %v677
    %v704 = vunpack.c.l.b16 %v681
    %v705 = vunpack.c.l.b16 %v684
    %v706 = vpack.c.b16 %v703, %v702
    %v707 = vpack.c.b16 %v705, %v704
    %v726 = vunpack.c.l.b16 %v686
    %v727 = vunpack.c.l.b16 %v687
    %v728 = vunpack.c.l.b16 %v688
    %v729 = vunpack.c.l.b16 %v689
    %v730 = vunpack.c.l.b16 %v690
    %v731 = vunpack.c.l.b16 %v691
    %v732 = vunpack.c.l.b16 %v692
    %v733 = vunpack.c.l.b16 %v693
    %v734 = vunpack.c.l.b16 %v694
    %v735 = vunpack.c.l.b16 %v695
    %v736 = vunpack.c.l.b16 %v696
    %v737 = vunpack.c.l.b16 %v697
    %v738 = vunpack.c.l.b16 %v698
    %v739 = vunpack.c.l.b16 %v699
    %v740 = vunpack.c.l.b16 %v700
    %v741 = vunpack.c.l.b16 %v701
    %v742 = vpack.c.b16 %v727, %v726
    %v743 = vpack.c.b16 %v729, %v728
    %v744 = vpack.c.b16 %v731, %v730
    %v745 = vpack.c.b16 %v733, %v732
    %v746 = vpack.c.b16 %v735, %v734
    %v747 = vpack.c.b16 %v737, %v736
    %v748 = vpack.c.b16 %v739, %v738
    %v749 = vpack.c.b16 %v741, %v740
    %758 = vmatprep.subr.bf16.mxu0 0
    %759 = vmatpush1.bf16.msra.mxu0 %v742
    %760 = vmatprep.subr.bf16.mxu0 0
    %761 = vmatpush1.bf16.msra.mxu0 %v743
    %762 = vmatprep.subr.bf16.mxu0 0
    %763 = vmatpush1.bf16.msra.mxu0 %v744
    %764 = vmatprep.subr.bf16.mxu0 0
    %765 = vmatpush1.bf16.msra.mxu0 %v745
    %766 = vmatprep.subr.bf16.mxu0 0
    %767 = vmatpush1.bf16.msra.mxu0 %v746
    %768 = vmatprep.subr.bf16.mxu0 0
    %769 = vmatpush1.bf16.msra.mxu0 %v747
    %770 = vmatprep.subr.bf16.mxu0 0
    %771 = vmatpush1.bf16.msra.mxu0 %v748
    %772 = vmatprep.subr.bf16.mxu0 0
    %773 = vmatpush1.bf16.msra.mxu0 %v749
    %774 = vmatprep.subr.bf16.mxu0 0
    %775 = vmatpush1.bf16.msra.mxu0 0
    %776 = vmatprep.subr.bf16.mxu0 0
    %777 = vmatpush1.bf16.msra.mxu0 0
    %778 = vmatprep.subr.bf16.mxu0 0
    %779 = vmatpush1.bf16.msra.mxu0 0
    %780 = vmatprep.subr.bf16.mxu0 0
    %781 = vmatpush1.bf16.msra.mxu0 0
    %782 = vmatprep.subr.bf16.mxu0 0
    %783 = vmatpush1.bf16.msra.mxu0 0
    %784 = vmatprep.subr.bf16.mxu0 0
    %785 = vmatpush1.bf16.msra.mxu0 0
    %786 = vmatprep.subr.bf16.mxu0 0
    %787 = vmatpush1.bf16.msra.mxu0 0
    %788 = vmatprep.subr.bf16.mxu0 0
    %789 = vmatpush1.bf16.msra.mxu0 0
    %790 = vmatprep.mubr.bf16.mxu0 0
    %791 = vmatmul.mubr.bf16.gmra.mrb[0].mxu0 %v706
    %v792 = vpop.f32.mrb[0].mxu0
    %v793 = vadd.f32 0.0, %v792
    %v794 = vpop.f32.mrb[0].mxu0
    %v795 = vpop.f32.mrb[0].mxu0
    %v796 = vadd.f32 0.0, %v795
    %v797 = vpop.f32.mrb[0].mxu0
    %798 = vmatprep.mubr.bf16.mxu0 0
    %799 = vmatmul.mubr.bf16.gmra.mrb[0].mxu0 %v707
    %v800 = vpop.f32.mrb[0].mxu0
    %v801 = vadd.f32 0.0, %v800
    %v802 = vpop.f32.mrb[0].mxu0
    %v803 = vpop.f32.mrb[0].mxu0
    %v804 = vadd.f32 0.0, %v803
    %v805 = vpop.f32.mrb[0].mxu0
    %806 = vdwg.mxu0
    %v807 = vadd.f32 %v664, %v793
    %v808 = vadd.f32 %v665, %v796
    %v809 = vadd.f32 %v666, %v801
    %v810 = vadd.f32 %v667, %v804
    %v811 = vld [vmem:[#allocation7 + $0x80] sm:$0x1]
    %v812 = vld [vmem:[#allocation7 + $0x88] sm:$0xff]
    %v813 = vld [vmem:[#allocation7 + $0x90] sm:$0xff]
    %v814 = vlaneseq
    %v815 = vshrl.u32 %v814, 7
    %v816 = vsub.s32 0, %v815
    %v817 = vrot.slane %v811, %v816
    %v818 = vadd.f32 %v807, %v817
    %v819 = vadd.f32 %v808, %v817
    %v820 = vadd.f32 %v809, %v817
    %v821 = vadd.f32 %v810, %v817
    %v822 = vmax.f32 %v818, 0.0
    %v823 = vmax.f32 %v819, 0.0
    %v824 = vmax.f32 %v820, 0.0
    %v825 = vmax.f32 %v821, 0.0
    %v826 = vmul.f32 %v822, %v812
    %v827 = vmul.f32 %v823, %v813
    %v828 = vmul.f32 %v824, %v812
    %v829 = vmul.f32 %v825, %v813
    %v830 = vmax.f32 %v826, %v827
    %v831 = vrot.slane %v830, 4
    %v832 = vmax.f32 %v830, %v831
    %v833 = vrot.slane %v832, 2
    %v834 = vmax.f32 %v832, %v833
    %v835 = vrot.slane %v834, 1
    %v836 = vmax.f32 %v834, %v835
    %v837 = vmax.f32 %v828, %v829
    %v838 = vrot.slane %v837, 4
    %v839 = vmax.f32 %v837, %v838
    %v840 = vrot.slane %v839, 2
    %v841 = vmax.f32 %v839, %v840
    %v842 = vrot.slane %v841, 1
    %v843 = vmax.f32 %v841, %v842
    %vm846 = vcmask 1041409
    %v847 = vsel %vm846, %v843, %v836
    %849 = vst [vmem:[#allocation8] sm:$0x3] %v847
    %v850 = vld [vmem:[#allocation7] sm:$0xff]
    %v851 = vld [vmem:[#allocation7 + $0x8] sm:$0xff]
    %v852 = vld [vmem:[#allocation7 + $0x10] sm:$0xff]
    %v853 = vld [vmem:[#allocation7 + $0x18] sm:$0xff]
    %v854 = vld [vmem:[#allocation7 + $0x20] sm:$0xff]
    %v855 = vld [vmem:[#allocation7 + $0x28] sm:$0xff]
    %v856 = vld [vmem:[#allocation7 + $0x30] sm:$0xff]
    %v857 = vld [vmem:[#allocation7 + $0x38] sm:$0xff]
    %v858 = vld [vmem:[#allocation7 + $0x40] sm:$0xff]
    %v859 = vld [vmem:[#allocation7 + $0x48] sm:$0xff]
    %v860 = vld [vmem:[#allocation7 + $0x50] sm:$0xff]
    %v861 = vld [vmem:[#allocation7 + $0x58] sm:$0xff]
    %v862 = vld [vmem:[#allocation7 + $0x60] sm:$0xff]
    %v863 = vld [vmem:[#allocation7 + $0x68] sm:$0xff]
    %v864 = vld [vmem:[#allocation7 + $0x70] sm:$0xff]
    %v865 = vld [vmem:[#allocation7 + $0x78] sm:$0xff]
    %v866 = vld [vmem:[#allocation7 + $0x81] sm:$0x1]
    %v867 = vlaneseq
    %v868 = vshrl.u32 %v867, 7
    %v869 = vsub.s32 0, %v868
    %v870 = vrot.slane %v866, %v869
    %871 = vmatprep.subr.mxu0 0.0
    %872 = vmatpush1.msra.mxu0 %v850
    %873 = vmatprep.subr.mxu0 0.0
    %874 = vmatpush1.msra.mxu0 %v851
    %875 = vmatprep.subr.mxu0 0.0
    %876 = vmatpush1.msra.mxu0 %v852
    %877 = vmatprep.subr.mxu0 0.0
    %878 = vmatpush1.msra.mxu0 %v853
    %879 = vmatprep.subr.mxu0 0.0
    %880 = vmatpush1.msra.mxu0 %v854
    %881 = vmatprep.subr.mxu0 0.0
    %882 = vmatpush1.msra.mxu0 %v855
    %883 = vmatprep.subr.mxu0 0.0
    %884 = vmatpush1.msra.mxu0 %v856
    %885 = vmatprep.subr.mxu0 0.0
    %886 = vmatpush1.msra.mxu0 %v857
    %887 = vmatprep.subr.mxu0 0.0
    %888 = vmatpush1.msra.mxu0 %v858
    %889 = vmatprep.subr.mxu0 0.0
    %890 = vmatpush1.msra.mxu0 %v859
    %891 = vmatprep.subr.mxu0 0.0
    %892 = vmatpush1.msra.mxu0 %v860
    %893 = vmatprep.subr.mxu0 0.0
    %894 = vmatpush1.msra.mxu0 %v861
    %895 = vmatprep.subr.mxu0 0.0
    %896 = vmatpush1.msra.mxu0 %v862
    %897 = vmatprep.subr.mxu0 0.0
    %898 = vmatpush1.msra.mxu0 %v863
    %899 = vmatprep.subr.mxu0 0.0
    %900 = vmatpush1.msra.mxu0 %v864
    %901 = vmatprep.subr.mxu0 0.0
    %902 = vmatpush1.msra.mxu0 %v865
    %903 = vmatprep.subr.mxu0 0.0
    %904 = vmatpush1.msra.mxu0 0.0
    %905 = vmatprep.subr.mxu0 0.0
    %906 = vmatpush1.msra.mxu0 0.0
    %907 = vmatprep.subr.mxu0 0.0
    %908 = vmatpush1.msra.mxu0 0.0
    %909 = vmatprep.subr.mxu0 0.0
    %910 = vmatpush1.msra.mxu0 0.0
    %911 = vmatprep.subr.mxu0 0.0
    %912 = vmatpush1.msra.mxu0 0.0
    %913 = vmatprep.subr.mxu0 0.0
    %914 = vmatpush1.msra.mxu0 0.0
    %915 = vmatprep.subr.mxu0 0.0
    %916 = vmatpush1.msra.mxu0 0.0
    %917 = vmatprep.subr.mxu0 0.0
    %918 = vmatpush1.msra.mxu0 0.0
    %919 = vmatprep.subr.mxu0 0.0
    %920 = vmatpush1.msra.mxu0 0.0
    %921 = vmatprep.subr.mxu0 0.0
    %922 = vmatpush1.msra.mxu0 0.0
    %923 = vmatprep.subr.mxu0 0.0
    %924 = vmatpush1.msra.mxu0 0.0
    %925 = vmatprep.subr.mxu0 0.0
    %926 = vmatpush1.msra.mxu0 0.0
    %927 = vmatprep.subr.mxu0 0.0
    %928 = vmatpush1.msra.mxu0 0.0
    %929 = vmatprep.subr.mxu0 0.0
    %930 = vmatpush1.msra.mxu0 0.0
    %931 = vmatprep.subr.mxu0 0.0
    %932 = vmatpush1.msra.mxu0 0.0
    %933 = vmatprep.subr.mxu0 0.0
    %934 = vmatpush1.msra.mxu0 0.0
    %935 = vmatprep.mubr.f32.mxu0 0.0
    %936 = vmatmul.mubr.f32.gmra.mrb[0].mxu0 %v847
    %v937 = vpop.f32.mrb[0].mxu0
    %v938 = vadd.f32 %v870, %v937
    %v939 = vpop.f32.mrb[0].mxu0
    %940 = vdwg.mxu0
    %941 = vst [vmem:[#allocation9] sm:$0x3] %v938
    // Predicated region
    $region26: #{tpu_custom_call.1} parent=1 // pred_check
      _
    $region27: #{tpu_custom_call.1} parent=1 // pred_check_branch
      %943 = sbr.rel (0) target = $region29
    $region28: #{tpu_custom_call.1} parent=1 // pred_region
      %s945 = ssub.s32 32, 32
      %946 = vsyncadd [#allocation4], %s945
      %s948 = sshll.u32 [#allocation8], 4
      %s949 = int_to_ptr.vmem [resolvable:$true] %s948
      %951 = dma.vmem_to_hbm [thread:$0]  %s949, 32, %s3, [#allocation4]
    $region29: #{tpu_custom_call.1} parent=1 // pred_fallthru
      _
    // Predicated region
    $region30: #{tpu_custom_call.1} parent=1 // pred_check
      _
    $region31: #{tpu_custom_call.1} parent=1 // pred_check_branch
      %953 = sbr.rel (0) target = $region33
    $region32: #{tpu_custom_call.1} parent=1 // pred_region
      %s955 = ssub.s32 32, 32
      %956 = vsyncadd [#allocation10], %s955
      %s958 = sshll.u32 [#allocation9], 4
      %s959 = int_to_ptr.vmem [resolvable:$true] %s958
      %961 = dma.vmem_to_hbm [thread:$0]  %s959, 32, %s4, [#allocation10]
    $region33: #{tpu_custom_call.1} parent=1 // pred_fallthru
      _
    // Predicated region
    $region34: #{tpu_custom_call.1} parent=1 // pred_check
      _
    $region35: #{tpu_custom_call.1} parent=1 // pred_check_branch
      %963 = sbr.rel (0) target = $region37
    $region36: #{tpu_custom_call.1} parent=1 // pred_region
      %964 = dma.done [#allocation4], 32
    $region37: #{tpu_custom_call.1} parent=1 // pred_fallthru
      _
    // Predicated region
    $region38: #{tpu_custom_call.1} parent=1 // pred_check
      _
    $region39: #{tpu_custom_call.1} parent=1 // pred_check_branch
      %966 = sbr.rel (0) target = $region41
    $region40: #{tpu_custom_call.1} parent=1 // pred_region
      %967 = dma.done [#allocation10], 32
    $region41: #{tpu_custom_call.1} parent=1 // pred_fallthru
      _
    %968 = vsyncpa [#allocation3], 1
    %969 = vsyncpa [#allocation6], 1
    %970 = vsyncpa [#allocation4], 1
    %971 = vsyncpa [#allocation10], 1

</llo_original>
